<compile_context>
chip_gen: v7x
topology: tpu7x:2x2x1
jax: 0.10.0
libtpu: 0.0.40
codegen_flags: <defaults>
</compile_context>

<pallas_src>
import numpy as np
import jax
import jax.numpy as jnp
from jax import lax
from jax.experimental import pallas as pl
from jax.experimental.pallas import tpu as pltpu


_VMEM = pl.BlockSpec(memory_space=pltpu.MemorySpace.VMEM)


# ----------------------------------------------------------------------------
# Parameter prep: fold the module-constant k_action into a2h once.
# ----------------------------------------------------------------------------
def prepare_params(params, k_action):
    p = dict(params)
    p["a2h_k"] = jnp.float32(k_action) * params["a2h"]
    return p


# ----------------------------------------------------------------------------
# Single-step cell (RNN.forward)
# ----------------------------------------------------------------------------
def rnn_cell_kernel(x_ref, h_ref, a_ref, rew_ref,
                    i2h_ref, h2h_ref, a2h_ref, r2h_ref, bh_ref, r_ref,
                    h2o_ref, bo_ref,
                    out_ref, newh_ref):
    h_prev = h_ref[...]
    pre = (jnp.dot(x_ref[...], i2h_ref[...], preferred_element_type=jnp.float32)
           + jnp.dot(h_prev, h2h_ref[...], preferred_element_type=jnp.float32)
           + jnp.dot(a_ref[...], a2h_ref[...], preferred_element_type=jnp.float32)
           + jnp.dot(rew_ref[...], r2h_ref[...], preferred_element_type=jnp.float32)
           + bh_ref[...])
    hidden_ = jnp.tanh(pre)
    # (1-r)*hidden_ + r*h  ==  hidden_ + r*(h - hidden_)
    new_h = hidden_ + r_ref[...] * (h_prev - hidden_)
    newh_ref[...] = new_h
    out_ref[...] = (jnp.dot(new_h, h2o_ref[...],
                            preferred_element_type=jnp.float32) + bo_ref[...])


def rnn_forward(p, x, hidden, action, reward):
    """Mirrors RNN.forward: returns (output, new_hidden).

    NOTE: if this single step is driven from a host loop, prefer
    rnn_forward_sequence (one dispatch) or wrap the step in lax.scan and use
    input_output_aliases to update `hidden` in place at the call site.
    """
    B = x.shape[0]
    H = p["h2h"].shape[0]
    O = p["h2o"].shape[1]

    out, new_h = pl.pallas_call(
        rnn_cell_kernel,
        out_shape=(jax.ShapeDtypeStruct((B, O), jnp.float32),
                   jax.ShapeDtypeStruct((B, H), jnp.float32)),
        in_specs=[_VMEM] * 12,
        out_specs=(_VMEM, _VMEM),
    )(x, hidden, action, reward,
      p["i2h"], p["h2h"], p["a2h_k"], p["r2h"], p["bh"], p["r"],
      p["h2o"], p["bo"])
    return out, new_h


# ----------------------------------------------------------------------------
# Sequence-fused cell (RNN.forward_sequence): whole time loop in ONE kernel,
# no grid, fully unrolled in-kernel fori_loop, everything VMEM-resident.
# ----------------------------------------------------------------------------
def rnn_seq_kernel(x_ref, a_ref, rew_ref, h0_ref,
                   i2h_ref, h2h_ref, a2h_ref, r2h_ref, bh_ref, r_ref,
                   h2p_ref, bp_ref,
                   pred_ref, hid_ref):
    T = x_ref.shape[0]
    B, H = h0_ref.shape
    P = bp_ref.shape[1]

    # Time-invariant pieces, computed / broadcast ONCE before the loop.
    rb = (jnp.dot(rew_ref[...], r2h_ref[...],
                  preferred_element_type=jnp.float32) + bh_ref[...])   # (B, H)
    r_b = pl.broadcast_to(r_ref[...], (B, H))
    bp_b = pl.broadcast_to(bp_ref[...], (B, P))
    i2h = i2h_ref[...]
    h2h = h2h_ref[...]
    a2h = a2h_ref[...]
    h2p = h2p_ref[...]

    def body(t, h_prev):
        pre = (jnp.dot(x_ref[t], i2h, preferred_element_type=jnp.float32)
               + jnp.dot(a_ref[t], a2h, preferred_element_type=jnp.float32)
               + jnp.dot(h_prev, h2h, preferred_element_type=jnp.float32)
               + rb)
        hidden_ = jnp.tanh(pre)
        new_h = hidden_ + r_b * (h_prev - hidden_)
        hid_ref[t] = new_h
        pred_ref[t] = (jnp.dot(new_h, h2p,
                               preferred_element_type=jnp.float32) + bp_b)
        return new_h

    # T is small & static: fully unroll for LLO scheduler visibility.
    lax.fori_loop(0, T, body, h0_ref[...], unroll=True)


def rnn_forward_sequence(p, inputs, hidden0, actions, reward, control=0):
    """Mirrors RNN.forward_sequence: returns (predicts(T,B,P), hiddens(T,B,H))."""
    T, B, _ = inputs.shape
    H = p["h2h"].shape[0]
    h2p = p["h2pr0"] if control == 0 else p["h2pr1"]
    bp = p["bpr0"] if control == 0 else p["bpr1"]
    P = h2p.shape[1]

    predicts, hiddens = pl.pallas_call(
        rnn_seq_kernel,
        out_shape=(jax.ShapeDtypeStruct((T, B, P), jnp.float32),
                   jax.ShapeDtypeStruct((T, B, H), jnp.float32)),
        in_specs=[_VMEM] * 12,
        out_specs=(_VMEM, _VMEM),
    )(inputs, actions, reward, hidden0,
      p["i2h"], p["h2h"], p["a2h_k"], p["r2h"], p["bh"], p["r"],
      h2p, bp)
    return predicts, hiddens


# ----------------------------------------------------------------------------
# Parameter init (matches the PyTorch __init__ shapes / scales) and references
# ----------------------------------------------------------------------------
def init_params(key, input_size, hidden_size, output_size,
                inertia=0.5, max_size=20):
    ks = jax.random.split(key, 8)
    f32 = jnp.float32
    p = {}
    p["i2h"] = (jax.random.normal(ks[0], (input_size, hidden_size), f32)
                * 10.0 * np.sqrt(2.0 / (input_size + hidden_size)))
    p["h2h"] = (jax.random.normal(ks[1], (hidden_size, hidden_size), f32)
                * 1.0 * np.sqrt(2.0 / hidden_size))
    p["h2o"] = (jax.random.normal(ks[2], (hidden_size, output_size), f32)
                * 0.01 * np.sqrt(2.0 / (hidden_size + output_size)))
    p["h2pr0"] = (jax.random.normal(ks[3], (hidden_size, 2 * max_size + 8), f32)
                  * 0.01 * np.sqrt(2.0 / (hidden_size + 2 * max_size + 8)))
    p["h2pr1"] = (jax.random.normal(ks[4], (hidden_size, 2 * max_size + 8), f32)
                  * 0.01 * np.sqrt(2.0 / (hidden_size + 2 * max_size + 8)))
    p["h2p_rls"] = (jax.random.normal(ks[5], (hidden_size, 2), f32)
                    * 0.01 * np.sqrt(2.0 / (hidden_size + 2)))
    p["r2h"] = (jax.random.normal(ks[6], (38, hidden_size), f32)
                * 0.1 * np.sqrt(2.0 / (hidden_size + 38)))
    p["a2h"] = (jax.random.normal(ks[7], (4, hidden_size), f32)
                * 1.0 * np.sqrt(2.0 / (hidden_size + 4)))
    p["bpr0"] = jnp.zeros((1, 2 * max_size + 8), f32)
    p["bpr1"] = jnp.zeros((1, 2 * max_size + 8), f32)
    p["bp_rls"] = jnp.zeros((1, 2), f32)
    p["bh"] = jnp.zeros((1, hidden_size), f32)
    p["bo"] = jnp.zeros((1, output_size), f32)
    p["r"] = inertia * jnp.ones((1, hidden_size), f32)
    return p


def rnn_forward_ref(params, x, hidden, action, reward, k_action):
    pre = (x @ params["i2h"] + hidden @ params["h2h"]
           + k_action * (action @ params["a2h"])
           + reward @ params["r2h"] + params["bh"])
    hidden_ = jnp.tanh(pre)
    new_h = (1.0 - params["r"]) * hidden_ + params["r"] * hidden
    out = new_h @ params["h2o"] + params["bo"]
    return out, new_h


def rnn_forward_sequence_ref(params, inputs, hidden0, actions, reward,
                             k_action, control=0):
    h2p = params["h2pr0"] if control == 0 else params["h2pr1"]
    bp = params["bpr0"] if control == 0 else params["bpr1"]
    h = hidden0
    preds, hiddens = [], []
    for t in range(inputs.shape[0]):
        pre = (inputs[t] @ params["i2h"] + h @ params["h2h"]
               + k_action * (actions[t] @ params["a2h"])
               + reward @ params["r2h"] + params["bh"])
        hidden_ = jnp.tanh(pre)
        h = (1.0 - params["r"]) * hidden_ + params["r"] * h
        preds.append(h @ h2p + bp)
        hiddens.append(h)
    return jnp.stack(preds), jnp.stack(hiddens)


# TODO(synk): crossentropy / initHidden / initAction are trivial pure-JAX
# helpers (softmax/mean/zeros) and are not worth dedicated kernels.

if __name__ == "__main__":
    batch = 2
    input_size = 16
    hidden_size = 32
    output_size = 4
    seq_len = 8
    k_action = 0.5  # exercise the (folded) action path; 0 is the module default

    key = jax.random.PRNGKey(0)
    kp, kx, kh, ka, kr, kxs, kas = jax.random.split(key, 7)

    params = init_params(kp, input_size, hidden_size, output_size)
    prepped = prepare_params(params, k_action)

    # ---- single-step forward ----
    x = jax.random.normal(kx, (batch, input_size), jnp.float32)
    hidden0 = jax.random.normal(kh, (batch, hidden_size), jnp.float32)
    action = jax.random.normal(ka, (batch, 4), jnp.float32)     # a2h is (4, H)
    reward = jax.random.normal(kr, (batch, 38), jnp.float32)    # r2h is (38, H)

    out, new_h = rnn_forward(prepped, x, hidden0, action, reward)
    out = jax.block_until_ready(out)
    new_h = jax.block_until_ready(new_h)

    out_ref, new_h_ref = rnn_forward_ref(params, x, hidden0, action, reward,
                                         k_action)
    np.testing.assert_allclose(np.asarray(out), np.asarray(out_ref),
                               rtol=1e-4, atol=1e-5)
    np.testing.assert_allclose(np.asarray(new_h), np.asarray(new_h_ref),
                               rtol=1e-4, atol=1e-5)

    # ---- sequence-fused forward (forward_sequence) ----
    xs = jax.random.normal(kxs, (seq_len, batch, input_size), jnp.float32)
    acts = jax.random.normal(kas, (seq_len, batch, 4), jnp.float32)

    preds, hiddens = rnn_forward_sequence(prepped, xs, hidden0, acts, reward,
                                          control=0)
    preds = jax.block_until_ready(preds)
    hiddens = jax.block_until_ready(hiddens)

    preds_ref, hiddens_ref = rnn_forward_sequence_ref(
        params, xs, hidden0, acts, reward, k_action, control=0)
    np.testing.assert_allclose(np.asarray(preds), np.asarray(preds_ref),
                               rtol=1e-4, atol=1e-5)
    np.testing.assert_allclose(np.asarray(hiddens), np.asarray(hiddens_ref),
                               rtol=1e-4, atol=1e-5)

    print("KERNEL_OK")
</pallas_src>

<mosaic_0001>
module attributes {stable_mosaic.version = 11 : i64} {
  func.func @rnn_cell_kernel(%arg0: memref<2x16xf32, #tpu.memory_space<vmem>>, %arg1: memref<2x32xf32, #tpu.memory_space<vmem>>, %arg2: memref<2x4xf32, #tpu.memory_space<vmem>>, %arg3: memref<2x38xf32, #tpu.memory_space<vmem>>, %arg4: memref<16x32xf32, #tpu.memory_space<vmem>>, %arg5: memref<32x32xf32, #tpu.memory_space<vmem>>, %arg6: memref<4x32xf32, #tpu.memory_space<vmem>>, %arg7: memref<38x32xf32, #tpu.memory_space<vmem>>, %arg8: memref<1x32xf32, #tpu.memory_space<vmem>>, %arg9: memref<1x32xf32, #tpu.memory_space<vmem>>, %arg10: memref<32x4xf32, #tpu.memory_space<vmem>>, %arg11: memref<1x4xf32, #tpu.memory_space<vmem>>, %arg12: memref<2x4xf32, #tpu.memory_space<vmem>>, %arg13: memref<2x32xf32, #tpu.memory_space<vmem>>) attributes {dimension_semantics = [], scalar_prefetch = 0 : i64, scratch_operands = 0 : i64, tpu.core_type = #tpu.core_type<tc>} {
    %c0 = arith.constant 0 : index
    %c0_0 = arith.constant 0 : index
    %0 = vector.load %arg1[%c0, %c0_0] : memref<2x32xf32, #tpu.memory_space<vmem>>, vector<2x32xf32>
    %c0_1 = arith.constant 0 : index
    %c0_2 = arith.constant 0 : index
    %1 = vector.load %arg0[%c0_1, %c0_2] : memref<2x16xf32, #tpu.memory_space<vmem>>, vector<2x16xf32>
    %c0_3 = arith.constant 0 : index
    %c0_4 = arith.constant 0 : index
    %2 = vector.load %arg4[%c0_3, %c0_4] : memref<16x32xf32, #tpu.memory_space<vmem>>, vector<16x32xf32>
    %cst = arith.constant dense<0.000000e+00> : vector<2x32xf32>
    %3 = tpu.matmul %1, %2, %cst {dimension_numbers = #tpu.dot_dimension_numbers<[1], [0], [0], [1], [0, 0, 1, 1], [], []>} : vector<2x16xf32>, vector<16x32xf32>, vector<2x32xf32> -> vector<2x32xf32>
    %c0_5 = arith.constant 0 : index
    %c0_6 = arith.constant 0 : index
    %4 = vector.load %arg5[%c0_5, %c0_6] : memref<32x32xf32, #tpu.memory_space<vmem>>, vector<32x32xf32>
    %cst_7 = arith.constant dense<0.000000e+00> : vector<2x32xf32>
    %5 = tpu.matmul %0, %4, %cst_7 {dimension_numbers = #tpu.dot_dimension_numbers<[1], [0], [0], [1], [0, 0, 1, 1], [], []>} : vector<2x32xf32>, vector<32x32xf32>, vector<2x32xf32> -> vector<2x32xf32>
    %6 = arith.addf %3, %5 : vector<2x32xf32>
    %c0_8 = arith.constant 0 : index
    %c0_9 = arith.constant 0 : index
    %7 = vector.load %arg2[%c0_8, %c0_9] : memref<2x4xf32, #tpu.memory_space<vmem>>, vector<2x4xf32>
    %c0_10 = arith.constant 0 : index
    %c0_11 = arith.constant 0 : index
    %8 = vector.load %arg6[%c0_10, %c0_11] : memref<4x32xf32, #tpu.memory_space<vmem>>, vector<4x32xf32>
    %cst_12 = arith.constant dense<0.000000e+00> : vector<2x32xf32>
    %9 = tpu.matmul %7, %8, %cst_12 {dimension_numbers = #tpu.dot_dimension_numbers<[1], [0], [0], [1], [0, 0, 1, 1], [], []>} : vector<2x4xf32>, vector<4x32xf32>, vector<2x32xf32> -> vector<2x32xf32>
    %10 = arith.addf %6, %9 : vector<2x32xf32>
    %c0_13 = arith.constant 0 : index
    %c0_14 = arith.constant 0 : index
    %11 = vector.load %arg3[%c0_13, %c0_14] : memref<2x38xf32, #tpu.memory_space<vmem>>, vector<2x38xf32>
    %c0_15 = arith.constant 0 : index
    %c0_16 = arith.constant 0 : index
    %12 = vector.load %arg7[%c0_15, %c0_16] : memref<38x32xf32, #tpu.memory_space<vmem>>, vector<38x32xf32>
    %cst_17 = arith.constant dense<0.000000e+00> : vector<2x32xf32>
    %13 = tpu.matmul %11, %12, %cst_17 {dimension_numbers = #tpu.dot_dimension_numbers<[1], [0], [0], [1], [0, 0, 1, 1], [], []>} : vector<2x38xf32>, vector<38x32xf32>, vector<2x32xf32> -> vector<2x32xf32>
    %14 = arith.addf %10, %13 : vector<2x32xf32>
    %c0_18 = arith.constant 0 : index
    %c0_19 = arith.constant 0 : index
    %15 = vector.load %arg8[%c0_18, %c0_19] : memref<1x32xf32, #tpu.memory_space<vmem>>, vector<1x32xf32>
    %16 = vector.broadcast %15 : vector<1x32xf32> to vector<2x32xf32>
    %17 = arith.addf %14, %16 : vector<2x32xf32>
    %18 = math.tanh %17 : vector<2x32xf32>
    %c0_20 = arith.constant 0 : index
    %c0_21 = arith.constant 0 : index
    %19 = vector.load %arg9[%c0_20, %c0_21] : memref<1x32xf32, #tpu.memory_space<vmem>>, vector<1x32xf32>
    %20 = arith.subf %0, %18 : vector<2x32xf32>
    %21 = vector.broadcast %19 : vector<1x32xf32> to vector<2x32xf32>
    %22 = arith.mulf %21, %20 : vector<2x32xf32>
    %23 = arith.addf %18, %22 : vector<2x32xf32>
    %c0_22 = arith.constant 0 : index
    %c0_23 = arith.constant 0 : index
    %24 = vector.load %arg13[%c0_22, %c0_23] : memref<2x32xf32, #tpu.memory_space<vmem>>, vector<2x32xf32>
    tpu.vector_store %arg13[%c0_22, %c0_23], %23 {strides = array<i32>} : memref<2x32xf32, #tpu.memory_space<vmem>>, vector<2x32xf32>,
    %c0_24 = arith.constant 0 : index
    %c0_25 = arith.constant 0 : index
    %25 = vector.load %arg10[%c0_24, %c0_25] : memref<32x4xf32, #tpu.memory_space<vmem>>, vector<32x4xf32>
    %cst_26 = arith.constant dense<0.000000e+00> : vector<2x4xf32>
    %26 = tpu.matmul %23, %25, %cst_26 {dimension_numbers = #tpu.dot_dimension_numbers<[1], [0], [0], [1], [0, 0, 1, 1], [], []>} : vector<2x32xf32>, vector<32x4xf32>, vector<2x4xf32> -> vector<2x4xf32>
    %c0_27 = arith.constant 0 : index
    %c0_28 = arith.constant 0 : index
    %27 = vector.load %arg11[%c0_27, %c0_28] : memref<1x4xf32, #tpu.memory_space<vmem>>, vector<1x4xf32>
    %28 = vector.broadcast %27 : vector<1x4xf32> to vector<2x4xf32>
    %29 = arith.addf %26, %28 : vector<2x4xf32>
    %c0_29 = arith.constant 0 : index
    %c0_30 = arith.constant 0 : index
    %30 = vector.load %arg12[%c0_29, %c0_30] : memref<2x4xf32, #tpu.memory_space<vmem>>, vector<2x4xf32>
    tpu.vector_store %arg12[%c0_29, %c0_30], %29 {strides = array<i32>} : memref<2x4xf32, #tpu.memory_space<vmem>>, vector<2x4xf32>,
    return
  }
}

</mosaic_0001>

<llo_original>
// kernel: tpu_custom_call.1
$region0: #{tpu_custom_call.1}
  #allocation0 [shape = 'u32[]', space=smem, size = 0x4, offset = 0x4, fixed_abs, tag = 'smem constant byte address 0x4 - core index']
  #allocation1 [shape = 'u32[144,128]{1,0:T(1,128)}', space=vmem, size = 0x12000, scoped, tag = 'internal scratch']
  %s0 = inlined_call_operand.vmem [shape: f32[2,16], index: 0, kind: input, shape index: {}]
  %s1 = inlined_call_operand.vmem [shape: f32[2,32], index: 1, kind: input, shape index: {}]
  %s2 = inlined_call_operand.vmem [shape: f32[2,4], index: 2, kind: input, shape index: {}]
  %s3 = inlined_call_operand.vmem [shape: f32[2,38], index: 3, kind: input, shape index: {}]
  %s4 = inlined_call_operand.vmem [shape: f32[16,32], index: 4, kind: input, shape index: {}]
  %s5 = inlined_call_operand.vmem [shape: f32[32,32], index: 5, kind: input, shape index: {}]
  %s6 = inlined_call_operand.vmem [shape: f32[4,32], index: 6, kind: input, shape index: {}]
  %s7 = inlined_call_operand.vmem [shape: f32[38,32], index: 7, kind: input, shape index: {}]
  %s8 = inlined_call_operand.vmem [shape: f32[1,32], index: 8, kind: input, shape index: {}]
  %s9 = inlined_call_operand.vmem [shape: f32[1,32], index: 9, kind: input, shape index: {}]
  %s10 = inlined_call_operand.vmem [shape: f32[32,4], index: 10, kind: input, shape index: {}]
  %s11 = inlined_call_operand.vmem [shape: f32[1,4], index: 11, kind: input, shape index: {}]
  %s12 = inlined_call_operand.hbm [shape: f32[2,4], index: 12, kind: output, shape index: {0}]
  %s13 = inlined_call_operand.hbm [shape: f32[2,32], index: 13, kind: output, shape index: {1}]
  %14 = xla_tuple %s12, %s13
  %s15 = sld [smem:[#allocation0]]
  $region66: #{tpu_custom_call.1} parent=0
    _
  %s17 = ssub.s32 1, %s15
  %s18 = scalar_select 0, %s17, %s15
  $region1: #{tpu_custom_call.1} parent=0
    #allocation2 [shape = 'u8[1024]{0}', space=vmem, size = 0x400, scoped, tag = 'output window, operand 0, single buffered']
    #allocation3 [shape = 's32[1]{0}', space=sflag, size = 0x4, scoped, tag = 'scoped memory for tpu_custom_call.1']
    #allocation4 [shape = 'u8[1024]{0}', space=vmem, size = 0x400, scoped, tag = 'output window, operand 1, single buffered']
    #allocation5 [shape = 's32[1]{0}', space=sflag, size = 0x4, scoped, tag = 'scoped memory for tpu_custom_call.1']
    %19 = vsyncpa [#allocation3], 0
    %20 = vsyncpa [#allocation5], 0
    // Predicated region
    $region2: #{tpu_custom_call.1} parent=1 // pred_check
      _
    $region3: #{tpu_custom_call.1} parent=1 // pred_check_branch
      %22 = sbr.rel (0) target = $region5
    $region4: #{tpu_custom_call.1} parent=1 // pred_region
      _
    $region5: #{tpu_custom_call.1} parent=1 // pred_fallthru
      _
    // Predicated region
    $region6: #{tpu_custom_call.1} parent=1 // pred_check
      _
    $region7: #{tpu_custom_call.1} parent=1 // pred_check_branch
      %24 = sbr.rel (0) target = $region9
    $region8: #{tpu_custom_call.1} parent=1 // pred_region
      _
    $region9: #{tpu_custom_call.1} parent=1 // pred_fallthru
      _
    // Predicated region
    $region10: #{tpu_custom_call.1} parent=1 // pred_check
      _
    $region11: #{tpu_custom_call.1} parent=1 // pred_check_branch
      %26 = sbr.rel (0) target = $region13
    $region12: #{tpu_custom_call.1} parent=1 // pred_region
      _
    $region13: #{tpu_custom_call.1} parent=1 // pred_fallthru
      _
    // Predicated region
    $region14: #{tpu_custom_call.1} parent=1 // pred_check
      _
    $region15: #{tpu_custom_call.1} parent=1 // pred_check_branch
      %28 = sbr.rel (0) target = $region17
    $region16: #{tpu_custom_call.1} parent=1 // pred_region
      _
    $region17: #{tpu_custom_call.1} parent=1 // pred_fallthru
      _
    // Predicated region
    $region18: #{tpu_custom_call.1} parent=1 // pred_check
      _
    $region19: #{tpu_custom_call.1} parent=1 // pred_check_branch
      %30 = sbr.rel (0) target = $region21
    $region20: #{tpu_custom_call.1} parent=1 // pred_region
      _
    $region21: #{tpu_custom_call.1} parent=1 // pred_fallthru
      _
    // Predicated region
    $region22: #{tpu_custom_call.1} parent=1 // pred_check
      _
    $region23: #{tpu_custom_call.1} parent=1 // pred_check_branch
      %32 = sbr.rel (0) target = $region25
    $region24: #{tpu_custom_call.1} parent=1 // pred_region
      _
    $region25: #{tpu_custom_call.1} parent=1 // pred_fallthru
      _
    // Predicated region
    $region26: #{tpu_custom_call.1} parent=1 // pred_check
      _
    $region27: #{tpu_custom_call.1} parent=1 // pred_check_branch
      %34 = sbr.rel (0) target = $region29
    $region28: #{tpu_custom_call.1} parent=1 // pred_region
      _
    $region29: #{tpu_custom_call.1} parent=1 // pred_fallthru
      _
    // Predicated region
    $region30: #{tpu_custom_call.1} parent=1 // pred_check
      _
    $region31: #{tpu_custom_call.1} parent=1 // pred_check_branch
      %36 = sbr.rel (0) target = $region33
    $region32: #{tpu_custom_call.1} parent=1 // pred_region
      _
    $region33: #{tpu_custom_call.1} parent=1 // pred_fallthru
      _
    // Predicated region
    $region34: #{tpu_custom_call.1} parent=1 // pred_check
      _
    $region35: #{tpu_custom_call.1} parent=1 // pred_check_branch
      %38 = sbr.rel (0) target = $region37
    $region36: #{tpu_custom_call.1} parent=1 // pred_region
      _
    $region37: #{tpu_custom_call.1} parent=1 // pred_fallthru
      _
    // Predicated region
    $region38: #{tpu_custom_call.1} parent=1 // pred_check
      _
    $region39: #{tpu_custom_call.1} parent=1 // pred_check_branch
      %40 = sbr.rel (0) target = $region41
    $region40: #{tpu_custom_call.1} parent=1 // pred_region
      _
    $region41: #{tpu_custom_call.1} parent=1 // pred_fallthru
      _
    // Predicated region
    $region42: #{tpu_custom_call.1} parent=1 // pred_check
      _
    $region43: #{tpu_custom_call.1} parent=1 // pred_check_branch
      %42 = sbr.rel (0) target = $region45
    $region44: #{tpu_custom_call.1} parent=1 // pred_region
      _
    $region45: #{tpu_custom_call.1} parent=1 // pred_fallthru
      _
    // Predicated region
    $region46: #{tpu_custom_call.1} parent=1 // pred_check
      _
    $region47: #{tpu_custom_call.1} parent=1 // pred_check_branch
      %44 = sbr.rel (0) target = $region49
    $region48: #{tpu_custom_call.1} parent=1 // pred_region
      _
    $region49: #{tpu_custom_call.1} parent=1 // pred_fallthru
      _
    %v45 = vld [vmem:[%s1] sm:$0x3]
    %v46 = vld [vmem:[%s0] sm:$0x3]
    %v47 = vld [vmem:[%s4] sm:$0xff]
    %v48 = vld [vmem:[%s4 + $0x8] sm:$0xff]
    %v49 = vld [vmem:[%s5] sm:$0xff]
    %v50 = vld [vmem:[%s5 + $0x8] sm:$0xff]
    %v51 = vld [vmem:[%s5 + $0x10] sm:$0xff]
    %v52 = vld [vmem:[%s5 + $0x18] sm:$0xff]
    %vm53 = vcmask 261120
    %v55 = vsel %vm53, %v45, 0
    %57 = vmatprep.subr.mxu0 0.0
    %58 = vmatpush1.msra.mxu0 %v49
    %59 = vmatprep.subr.mxu0 0.0
    %60 = vmatpush1.msra.mxu0 %v50
    %61 = vmatprep.subr.mxu0 0.0
    %62 = vmatpush1.msra.mxu0 %v51
    %63 = vmatprep.subr.mxu0 0.0
    %64 = vmatpush1.msra.mxu0 %v52
    %65 = vmatprep.subr.mxu0 0.0
    %66 = vmatpush1.msra.mxu0 0.0
    %67 = vmatprep.subr.mxu0 0.0
    %68 = vmatpush1.msra.mxu0 0.0
    %69 = vmatprep.subr.mxu0 0.0
    %70 = vmatpush1.msra.mxu0 0.0
    %71 = vmatprep.subr.mxu0 0.0
    %72 = vmatpush1.msra.mxu0 0.0
    %73 = vmatprep.subr.mxu0 0.0
    %74 = vmatpush1.msra.mxu0 0.0
    %75 = vmatprep.subr.mxu0 0.0
    %76 = vmatpush1.msra.mxu0 0.0
    %77 = vmatprep.subr.mxu0 0.0
    %78 = vmatpush1.msra.mxu0 0.0
    %79 = vmatprep.subr.mxu0 0.0
    %80 = vmatpush1.msra.mxu0 0.0
    %81 = vmatprep.subr.mxu0 0.0
    %82 = vmatpush1.msra.mxu0 0.0
    %83 = vmatprep.subr.mxu0 0.0
    %84 = vmatpush1.msra.mxu0 0.0
    %85 = vmatprep.subr.mxu0 0.0
    %86 = vmatpush1.msra.mxu0 0.0
    %87 = vmatprep.subr.mxu0 0.0
    %88 = vmatpush1.msra.mxu0 0.0
    %89 = vmatprep.subr.mxu0 0.0
    %90 = vmatpush1.msra.mxu0 0.0
    %91 = vmatprep.subr.mxu0 0.0
    %92 = vmatpush1.msra.mxu0 0.0
    %93 = vmatprep.subr.mxu0 0.0
    %94 = vmatpush1.msra.mxu0 0.0
    %95 = vmatprep.subr.mxu0 0.0
    %96 = vmatpush1.msra.mxu0 0.0
    %97 = vmatprep.subr.mxu0 0.0
    %98 = vmatpush1.msra.mxu0 0.0
    %99 = vmatprep.subr.mxu0 0.0
    %100 = vmatpush1.msra.mxu0 0.0
    %101 = vmatprep.subr.mxu0 0.0
    %102 = vmatpush1.msra.mxu0 0.0
    %103 = vmatprep.subr.mxu0 0.0
    %104 = vmatpush1.msra.mxu0 0.0
    %105 = vmatprep.subr.mxu0 0.0
    %106 = vmatpush1.msra.mxu0 0.0
    %107 = vmatprep.subr.mxu0 0.0
    %108 = vmatpush1.msra.mxu0 0.0
    %109 = vmatprep.subr.mxu0 0.0
    %110 = vmatpush1.msra.mxu0 0.0
    %111 = vmatprep.subr.mxu0 0.0
    %112 = vmatpush1.msra.mxu0 0.0
    %113 = vmatprep.subr.mxu0 0.0
    %114 = vmatpush1.msra.mxu0 0.0
    %115 = vmatprep.subr.mxu0 0.0
    %116 = vmatpush1.msra.mxu0 0.0
    %117 = vmatprep.subr.mxu0 0.0
    %118 = vmatpush1.msra.mxu0 0.0
    %119 = vmatprep.subr.mxu0 0.0
    %120 = vmatpush1.msra.mxu0 0.0
    %121 = vmatprep.mubr.f32.mxu0 0.0
    %122 = vmatmul.mubr.f32.gmra.mrb[0].mxu0 %v55
    %v123 = vpop.f32.mrb[0].mxu0
    %v124 = vadd.f32 0.0, %v123
    %v125 = vpop.f32.mrb[0].mxu0
    %126 = vdwg.mxu0
    %vm127 = vcmask 130048
    %v129 = vsel %vm127, %v46, 0
    %131 = vmatprep.subr.mxu0 0.0
    %132 = vmatpush1.msra.mxu0 %v47
    %133 = vmatprep.subr.mxu0 0.0
    %134 = vmatpush1.msra.mxu0 %v48
    %135 = vmatprep.subr.mxu0 0.0
    %136 = vmatpush1.msra.mxu0 0.0
    %137 = vmatprep.subr.mxu0 0.0
    %138 = vmatpush1.msra.mxu0 0.0
    %139 = vmatprep.subr.mxu0 0.0
    %140 = vmatpush1.msra.mxu0 0.0
    %141 = vmatprep.subr.mxu0 0.0
    %142 = vmatpush1.msra.mxu0 0.0
    %143 = vmatprep.subr.mxu0 0.0
    %144 = vmatpush1.msra.mxu0 0.0
    %145 = vmatprep.subr.mxu0 0.0
    %146 = vmatpush1.msra.mxu0 0.0
    %147 = vmatprep.subr.mxu0 0.0
    %148 = vmatpush1.msra.mxu0 0.0
    %149 = vmatprep.subr.mxu0 0.0
    %150 = vmatpush1.msra.mxu0 0.0
    %151 = vmatprep.subr.mxu0 0.0
    %152 = vmatpush1.msra.mxu0 0.0
    %153 = vmatprep.subr.mxu0 0.0
    %154 = vmatpush1.msra.mxu0 0.0
    %155 = vmatprep.subr.mxu0 0.0
    %156 = vmatpush1.msra.mxu0 0.0
    %157 = vmatprep.subr.mxu0 0.0
    %158 = vmatpush1.msra.mxu0 0.0
    %159 = vmatprep.subr.mxu0 0.0
    %160 = vmatpush1.msra.mxu0 0.0
    %161 = vmatprep.subr.mxu0 0.0
    %162 = vmatpush1.msra.mxu0 0.0
    %163 = vmatprep.subr.mxu0 0.0
    %164 = vmatpush1.msra.mxu0 0.0
    %165 = vmatprep.subr.mxu0 0.0
    %166 = vmatpush1.msra.mxu0 0.0
    %167 = vmatprep.subr.mxu0 0.0
    %168 = vmatpush1.msra.mxu0 0.0
    %169 = vmatprep.subr.mxu0 0.0
    %170 = vmatpush1.msra.mxu0 0.0
    %171 = vmatprep.subr.mxu0 0.0
    %172 = vmatpush1.msra.mxu0 0.0
    %173 = vmatprep.subr.mxu0 0.0
    %174 = vmatpush1.msra.mxu0 0.0
    %175 = vmatprep.subr.mxu0 0.0
    %176 = vmatpush1.msra.mxu0 0.0
    %177 = vmatprep.subr.mxu0 0.0
    %178 = vmatpush1.msra.mxu0 0.0
    %179 = vmatprep.subr.mxu0 0.0
    %180 = vmatpush1.msra.mxu0 0.0
    %181 = vmatprep.subr.mxu0 0.0
    %182 = vmatpush1.msra.mxu0 0.0
    %183 = vmatprep.subr.mxu0 0.0
    %184 = vmatpush1.msra.mxu0 0.0
    %185 = vmatprep.subr.mxu0 0.0
    %186 = vmatpush1.msra.mxu0 0.0
    %187 = vmatprep.subr.mxu0 0.0
    %188 = vmatpush1.msra.mxu0 0.0
    %189 = vmatprep.subr.mxu0 0.0
    %190 = vmatpush1.msra.mxu0 0.0
    %191 = vmatprep.subr.mxu0 0.0
    %192 = vmatpush1.msra.mxu0 0.0
    %193 = vmatprep.subr.mxu0 0.0
    %194 = vmatpush1.msra.mxu0 0.0
    %195 = vmatprep.mubr.f32.mxu0 0.0
    %196 = vmatmul.mubr.f32.gmra.mrb[0].mxu0 %v129
    %v197 = vpop.f32.mrb[0].mxu0
    %v198 = vadd.f32 %v124, %v197
    %v199 = vpop.f32.mrb[0].mxu0
    %200 = vdwg.mxu0
    %v201 = vld [vmem:[%s2] sm:$0x3]
    %v202 = vld [vmem:[%s6] sm:$0xf]
    %vm203 = vcmask 31744
    %v205 = vsel %vm203, %v201, 0
    %vm207 = vcmask 1043456
    %v209 = vsel %vm207, %v202, 0
    %211 = vmatprep.subr.mxu0 0.0
    %212 = vmatpush1.msra.mxu0 %v209
    %213 = vmatprep.subr.mxu0 0.0
    %214 = vmatpush1.msra.mxu0 0.0
    %215 = vmatprep.subr.mxu0 0.0
    %216 = vmatpush1.msra.mxu0 0.0
    %217 = vmatprep.subr.mxu0 0.0
    %218 = vmatpush1.msra.mxu0 0.0
    %219 = vmatprep.subr.mxu0 0.0
    %220 = vmatpush1.msra.mxu0 0.0
    %221 = vmatprep.subr.mxu0 0.0
    %222 = vmatpush1.msra.mxu0 0.0
    %223 = vmatprep.subr.mxu0 0.0
    %224 = vmatpush1.msra.mxu0 0.0
    %225 = vmatprep.subr.mxu0 0.0
    %226 = vmatpush1.msra.mxu0 0.0
    %227 = vmatprep.subr.mxu0 0.0
    %228 = vmatpush1.msra.mxu0 0.0
    %229 = vmatprep.subr.mxu0 0.0
    %230 = vmatpush1.msra.mxu0 0.0
    %231 = vmatprep.subr.mxu0 0.0
    %232 = vmatpush1.msra.mxu0 0.0
    %233 = vmatprep.subr.mxu0 0.0
    %234 = vmatpush1.msra.mxu0 0.0
    %235 = vmatprep.subr.mxu0 0.0
    %236 = vmatpush1.msra.mxu0 0.0
    %237 = vmatprep.subr.mxu0 0.0
    %238 = vmatpush1.msra.mxu0 0.0
    %239 = vmatprep.subr.mxu0 0.0
    %240 = vmatpush1.msra.mxu0 0.0
    %241 = vmatprep.subr.mxu0 0.0
    %242 = vmatpush1.msra.mxu0 0.0
    %243 = vmatprep.subr.mxu0 0.0
    %244 = vmatpush1.msra.mxu0 0.0
    %245 = vmatprep.subr.mxu0 0.0
    %246 = vmatpush1.msra.mxu0 0.0
    %247 = vmatprep.subr.mxu0 0.0
    %248 = vmatpush1.msra.mxu0 0.0
    %249 = vmatprep.subr.mxu0 0.0
    %250 = vmatpush1.msra.mxu0 0.0
    %251 = vmatprep.subr.mxu0 0.0
    %252 = vmatpush1.msra.mxu0 0.0
    %253 = vmatprep.subr.mxu0 0.0
    %254 = vmatpush1.msra.mxu0 0.0
    %255 = vmatprep.subr.mxu0 0.0
    %256 = vmatpush1.msra.mxu0 0.0
    %257 = vmatprep.subr.mxu0 0.0
    %258 = vmatpush1.msra.mxu0 0.0
    %259 = vmatprep.subr.mxu0 0.0
    %260 = vmatpush1.msra.mxu0 0.0
    %261 = vmatprep.subr.mxu0 0.0
    %262 = vmatpush1.msra.mxu0 0.0
    %263 = vmatprep.subr.mxu0 0.0
    %264 = vmatpush1.msra.mxu0 0.0
    %265 = vmatprep.subr.mxu0 0.0
    %266 = vmatpush1.msra.mxu0 0.0
    %267 = vmatprep.subr.mxu0 0.0
    %268 = vmatpush1.msra.mxu0 0.0
    %269 = vmatprep.subr.mxu0 0.0
    %270 = vmatpush1.msra.mxu0 0.0
    %271 = vmatprep.subr.mxu0 0.0
    %272 = vmatpush1.msra.mxu0 0.0
    %273 = vmatprep.subr.mxu0 0.0
    %274 = vmatpush1.msra.mxu0 0.0
    %275 = vmatprep.mubr.f32.mxu0 0.0
    %276 = vmatmul.mubr.f32.gmra.mrb[0].mxu0 %v205
    %v277 = vpop.f32.mrb[0].mxu0
    %v278 = vadd.f32 0.0, %v277
    %v279 = vpop.f32.mrb[0].mxu0
    %280 = vdwg.mxu0
    %v281 = vadd.f32 %v198, %v278
    %v282 = vld [vmem:[%s3] sm:$0x3]
    %v283 = vld [vmem:[%s7] sm:$0xff]
    %v284 = vld [vmem:[%s7 + $0x8] sm:$0xff]
    %v285 = vld [vmem:[%s7 + $0x10] sm:$0xff]
    %v286 = vld [vmem:[%s7 + $0x18] sm:$0xff]
    %v287 = vld [vmem:[%s7 + $0x20] sm:$0x3f]
    %vm288 = vcmask 310272
    %v290 = vsel %vm288, %v282, 0
    %vm292 = vcmask 1045504
    %v294 = vsel %vm292, %v287, 0
    %296 = vmatprep.subr.mxu0 0.0
    %297 = vmatpush1.msra.mxu0 %v283
    %298 = vmatprep.subr.mxu0 0.0
    %299 = vmatpush1.msra.mxu0 %v284
    %300 = vmatprep.subr.mxu0 0.0
    %301 = vmatpush1.msra.mxu0 %v285
    %302 = vmatprep.subr.mxu0 0.0
    %303 = vmatpush1.msra.mxu0 %v286
    %304 = vmatprep.subr.mxu0 0.0
    %305 = vmatpush1.msra.mxu0 %v294
    %306 = vmatprep.subr.mxu0 0.0
    %307 = vmatpush1.msra.mxu0 0.0
    %308 = vmatprep.subr.mxu0 0.0
    %309 = vmatpush1.msra.mxu0 0.0
    %310 = vmatprep.subr.mxu0 0.0
    %311 = vmatpush1.msra.mxu0 0.0
    %312 = vmatprep.subr.mxu0 0.0
    %313 = vmatpush1.msra.mxu0 0.0
    %314 = vmatprep.subr.mxu0 0.0
    %315 = vmatpush1.msra.mxu0 0.0
    %316 = vmatprep.subr.mxu0 0.0
    %317 = vmatpush1.msra.mxu0 0.0
    %318 = vmatprep.subr.mxu0 0.0
    %319 = vmatpush1.msra.mxu0 0.0
    %320 = vmatprep.subr.mxu0 0.0
    %321 = vmatpush1.msra.mxu0 0.0
    %322 = vmatprep.subr.mxu0 0.0
    %323 = vmatpush1.msra.mxu0 0.0
    %324 = vmatprep.subr.mxu0 0.0
    %325 = vmatpush1.msra.mxu0 0.0
    %326 = vmatprep.subr.mxu0 0.0
    %327 = vmatpush1.msra.mxu0 0.0
    %328 = vmatprep.subr.mxu0 0.0
    %329 = vmatpush1.msra.mxu0 0.0
    %330 = vmatprep.subr.mxu0 0.0
    %331 = vmatpush1.msra.mxu0 0.0
    %332 = vmatprep.subr.mxu0 0.0
    %333 = vmatpush1.msra.mxu0 0.0
    %334 = vmatprep.subr.mxu0 0.0
    %335 = vmatpush1.msra.mxu0 0.0
    %336 = vmatprep.subr.mxu0 0.0
    %337 = vmatpush1.msra.mxu0 0.0
    %338 = vmatprep.subr.mxu0 0.0
    %339 = vmatpush1.msra.mxu0 0.0
    %340 = vmatprep.subr.mxu0 0.0
    %341 = vmatpush1.msra.mxu0 0.0
    %342 = vmatprep.subr.mxu0 0.0
    %343 = vmatpush1.msra.mxu0 0.0
    %344 = vmatprep.subr.mxu0 0.0
    %345 = vmatpush1.msra.mxu0 0.0
    %346 = vmatprep.subr.mxu0 0.0
    %347 = vmatpush1.msra.mxu0 0.0
    %348 = vmatprep.subr.mxu0 0.0
    %349 = vmatpush1.msra.mxu0 0.0
    %350 = vmatprep.subr.mxu0 0.0
    %351 = vmatpush1.msra.mxu0 0.0
    %352 = vmatprep.subr.mxu0 0.0
    %353 = vmatpush1.msra.mxu0 0.0
    %354 = vmatprep.subr.mxu0 0.0
    %355 = vmatpush1.msra.mxu0 0.0
    %356 = vmatprep.subr.mxu0 0.0
    %357 = vmatpush1.msra.mxu0 0.0
    %358 = vmatprep.subr.mxu0 0.0
    %359 = vmatpush1.msra.mxu0 0.0
    %360 = vmatprep.mubr.f32.mxu0 0.0
    %361 = vmatmul.mubr.f32.gmra.mrb[0].mxu0 %v290
    %v362 = vpop.f32.mrb[0].mxu0
    %v363 = vadd.f32 0.0, %v362
    %v364 = vpop.f32.mrb[0].mxu0
    %365 = vdwg.mxu0
    %v366 = vadd.f32 %v281, %v363
    %v367 = vld [vmem:[%s8] sm:$0x1]
    %v369 = vlaneseq
    %v370 = vshrl.u32 %v369, 7
    %v371 = vsub.s32 0, %v370
    %v372 = vrot.slane %v367, %v371
    %v374 = vadd.f32 %v366, %v372
    %v375 = vtanh.pop %v374
    %v376 = vld [vmem:[%s9] sm:$0x1]
    %v377 = vsub.f32 %v45, %v375
    %v379 = vlaneseq
    %v380 = vshrl.u32 %v379, 7
    %v381 = vsub.s32 0, %v380
    %v382 = vrot.slane %v376, %v381
    %v384 = vmul.f32 %v382, %v377
    %v385 = vadd.f32 %v375, %v384
    %vm386 = vcmask 254976
    %387 = vst.msk [vmem:[#allocation4] sm:$0x3] %vm386, %v385
    %v388 = vld [vmem:[%s10] sm:$0xff]
    %v389 = vld [vmem:[%s10 + $0x8] sm:$0xff]
    %v390 = vld [vmem:[%s10 + $0x10] sm:$0xff]
    %v391 = vld [vmem:[%s10 + $0x18] sm:$0xff]
    %v392 = vld [vmem:[%s11] sm:$0x1]
    %v394 = vlaneseq
    %v395 = vshrl.u32 %v394, 7
    %v396 = vsub.s32 0, %v395
    %v397 = vrot.slane %v392, %v396
    %v400 = vsel %vm53, %v385, 0
    %402 = vmatprep.subr.mxu0 0.0
    %403 = vmatpush1.msra.mxu0 %v388
    %404 = vmatprep.subr.mxu0 0.0
    %405 = vmatpush1.msra.mxu0 %v389
    %406 = vmatprep.subr.mxu0 0.0
    %407 = vmatpush1.msra.mxu0 %v390
    %408 = vmatprep.subr.mxu0 0.0
    %409 = vmatpush1.msra.mxu0 %v391
    %410 = vmatprep.subr.mxu0 0.0
    %411 = vmatpush1.msra.mxu0 0.0
    %412 = vmatprep.subr.mxu0 0.0
    %413 = vmatpush1.msra.mxu0 0.0
    %414 = vmatprep.subr.mxu0 0.0
    %415 = vmatpush1.msra.mxu0 0.0
    %416 = vmatprep.subr.mxu0 0.0
    %417 = vmatpush1.msra.mxu0 0.0
    %418 = vmatprep.subr.mxu0 0.0
    %419 = vmatpush1.msra.mxu0 0.0
    %420 = vmatprep.subr.mxu0 0.0
    %421 = vmatpush1.msra.mxu0 0.0
    %422 = vmatprep.subr.mxu0 0.0
    %423 = vmatpush1.msra.mxu0 0.0
    %424 = vmatprep.subr.mxu0 0.0
    %425 = vmatpush1.msra.mxu0 0.0
    %426 = vmatprep.subr.mxu0 0.0
    %427 = vmatpush1.msra.mxu0 0.0
    %428 = vmatprep.subr.mxu0 0.0
    %429 = vmatpush1.msra.mxu0 0.0
    %430 = vmatprep.subr.mxu0 0.0
    %431 = vmatpush1.msra.mxu0 0.0
    %432 = vmatprep.subr.mxu0 0.0
    %433 = vmatpush1.msra.mxu0 0.0
    %434 = vmatprep.subr.mxu0 0.0
    %435 = vmatpush1.msra.mxu0 0.0
    %436 = vmatprep.subr.mxu0 0.0
    %437 = vmatpush1.msra.mxu0 0.0
    %438 = vmatprep.subr.mxu0 0.0
    %439 = vmatpush1.msra.mxu0 0.0
    %440 = vmatprep.subr.mxu0 0.0
    %441 = vmatpush1.msra.mxu0 0.0
    %442 = vmatprep.subr.mxu0 0.0
    %443 = vmatpush1.msra.mxu0 0.0
    %444 = vmatprep.subr.mxu0 0.0
    %445 = vmatpush1.msra.mxu0 0.0
    %446 = vmatprep.subr.mxu0 0.0
    %447 = vmatpush1.msra.mxu0 0.0
    %448 = vmatprep.subr.mxu0 0.0
    %449 = vmatpush1.msra.mxu0 0.0
    %450 = vmatprep.subr.mxu0 0.0
    %451 = vmatpush1.msra.mxu0 0.0
    %452 = vmatprep.subr.mxu0 0.0
    %453 = vmatpush1.msra.mxu0 0.0
    %454 = vmatprep.subr.mxu0 0.0
    %455 = vmatpush1.msra.mxu0 0.0
    %456 = vmatprep.subr.mxu0 0.0
    %457 = vmatpush1.msra.mxu0 0.0
    %458 = vmatprep.subr.mxu0 0.0
    %459 = vmatpush1.msra.mxu0 0.0
    %460 = vmatprep.subr.mxu0 0.0
    %461 = vmatpush1.msra.mxu0 0.0
    %462 = vmatprep.subr.mxu0 0.0
    %463 = vmatpush1.msra.mxu0 0.0
    %464 = vmatprep.subr.mxu0 0.0
    %465 = vmatpush1.msra.mxu0 0.0
    %466 = vmatprep.mubr.f32.mxu0 0.0
    %467 = vmatmul.mubr.f32.gmra.mrb[0].mxu0 %v400
    %v468 = vpop.f32.mrb[0].mxu0
    %v469 = vadd.f32 %v397, %v468
    %v470 = vpop.f32.mrb[0].mxu0
    %471 = vdwg.mxu0
    %vm472 = vcmask 25600
    %473 = vst.msk [vmem:[#allocation2] sm:$0x3] %vm472, %v469
    // Predicated region
    $region50: #{tpu_custom_call.1} parent=1 // pred_check
      _
    $region51: #{tpu_custom_call.1} parent=1 // pred_check_branch
      %475 = sbr.rel (0) target = $region53
    $region52: #{tpu_custom_call.1} parent=1 // pred_region
      %s477 = ssub.s32 32, 32
      %478 = vsyncadd [#allocation3], %s477
      %s480 = sshll.u32 [#allocation2], 4
      %s481 = int_to_ptr.vmem [resolvable:$true] %s480
      %483 = dma.vmem_to_hbm [thread:$0]  %s481, 32, %s12, [#allocation3]
    $region53: #{tpu_custom_call.1} parent=1 // pred_fallthru
      _
    // Predicated region
    $region54: #{tpu_custom_call.1} parent=1 // pred_check
      _
    $region55: #{tpu_custom_call.1} parent=1 // pred_check_branch
      %485 = sbr.rel (0) target = $region57
    $region56: #{tpu_custom_call.1} parent=1 // pred_region
      %s487 = ssub.s32 32, 32
      %488 = vsyncadd [#allocation5], %s487
      %s490 = sshll.u32 [#allocation4], 4
      %s491 = int_to_ptr.vmem [resolvable:$true] %s490
      %493 = dma.vmem_to_hbm [thread:$0]  %s491, 32, %s13, [#allocation5]
    $region57: #{tpu_custom_call.1} parent=1 // pred_fallthru
      _
    // Predicated region
    $region58: #{tpu_custom_call.1} parent=1 // pred_check
      _
    $region59: #{tpu_custom_call.1} parent=1 // pred_check_branch
      %495 = sbr.rel (0) target = $region61
    $region60: #{tpu_custom_call.1} parent=1 // pred_region
      %496 = dma.done [#allocation3], 32
    $region61: #{tpu_custom_call.1} parent=1 // pred_fallthru
      _
    // Predicated region
    $region62: #{tpu_custom_call.1} parent=1 // pred_check
      _
    $region63: #{tpu_custom_call.1} parent=1 // pred_check_branch
      %498 = sbr.rel (0) target = $region65
    $region64: #{tpu_custom_call.1} parent=1 // pred_region
      %499 = dma.done [#allocation5], 32
    $region65: #{tpu_custom_call.1} parent=1 // pred_fallthru
      _
    %500 = vsyncpa [#allocation3], 1
    %501 = vsyncpa [#allocation5], 1

</llo_original>
